<compile_context>
chip_gen: v7x
topology: tpu7x:2x2x1
jax: 0.10.0
libtpu: 0.0.40
codegen_flags: <defaults>
</compile_context>

<pallas_src>
import functools
import math

import jax
import jax.numpy as jnp
from jax import lax
from jax.experimental import pallas as pl
from jax.experimental.pallas import tpu as pltpu


def _sinusoidal_kernel(x_ref, out_ref, *, scale, half_dim, t_dim, aligned):
    # x_ref:   (TILE_B, 1)      float32
    # out_ref: (TILE_B, t_dim)  out dtype
    x = x_ref[...]
    if aligned:
        # half_dim is a multiple of 128: two lane-aligned unmasked half stores,
        # no concat temporary, no lane shuffle.
        freqs = (lax.broadcasted_iota(jnp.int32, (1, half_dim), 1)
                 .astype(jnp.float32) * scale)
        emb = x * freqs                                        # (TILE_B, half_dim)
        out_ref[:, :half_dim] = jnp.sin(emb).astype(out_ref.dtype)
        out_ref[:, half_dim:] = jnp.cos(emb).astype(out_ref.dtype)
    else:
        # Narrow / unaligned half: build a full-width phase so that
        # cos(theta) = sin(theta + pi/2) — one transcendental pass, one
        # unmasked full-block store, no cross-lane concat.
        lane = lax.broadcasted_iota(jnp.int32, (1, t_dim), 1)
        is_cos = lane >= half_dim
        col = jnp.where(is_cos, lane - half_dim, lane).astype(jnp.float32)
        phase = x * (col * scale) + jnp.where(
            is_cos, jnp.float32(0.5 * math.pi), jnp.float32(0.0))
        out_ref[...] = jnp.sin(phase).astype(out_ref.dtype)


def sinusoidal_pos_emb(x, t_dim, *, tile_b=1024, out_dtype=jnp.float32):
    """x: (B,) float timesteps -> (B, t_dim) sinusoidal embedding."""
    if t_dim % 2 != 0 or t_dim < 4:
        # half_dim == 1 would divide by zero in the original module as well.
        raise ValueError("t_dim must be an even integer >= 4")
    half_dim = t_dim // 2
    scale = -math.log(10000.0) / (half_dim - 1)

    b = x.shape[0]
    b8 = pl.cdiv(b, 8) * 8                      # batch rounded up to sublanes
    tile_b = max(8, (min(int(tile_b), b8) // 8) * 8)
    # v7x: keep >= 2 grid steps whenever the batch allows, so the "parallel"
    # grid axis can be sharded across both TensorCores.
    two_step_cap = max(8, (b8 // 2 // 8) * 8)
    tile_b = min(tile_b, two_step_cap)
    grid = pl.cdiv(b, tile_b)                   # ragged last block is masked

    x2d = x.astype(jnp.float32).reshape(b, 1)

    kernel = functools.partial(
        _sinusoidal_kernel, scale=scale, half_dim=half_dim, t_dim=t_dim,
        aligned=(half_dim % 128 == 0))

    return pl.pallas_call(
        kernel,
        out_shape=jax.ShapeDtypeStruct((b, t_dim), out_dtype),
        grid=(grid,),
        in_specs=[pl.BlockSpec((tile_b, 1), lambda i: (i, 0))],
        out_specs=pl.BlockSpec((tile_b, t_dim), lambda i: (i, 0)),
        compiler_params=pltpu.CompilerParams(
            dimension_semantics=("parallel",),
        ),
    )(x2d)


def _reference(x, t_dim):
    half_dim = t_dim // 2
    scale = -math.log(10000.0) / (half_dim - 1)
    freqs = jnp.arange(half_dim, dtype=jnp.float32) * scale
    emb = x.astype(jnp.float32)[:, None] * freqs[None, :]
    return jnp.concatenate([jnp.sin(emb), jnp.cos(emb)], axis=1)


if __name__ == "__main__":
    key = jax.random.PRNGKey(0)
    k1, k2, k3 = jax.random.split(key, 3)

    # Tolerance note: timesteps up to ~1000 give sin/cos arguments up to ~9.2e3;
    # f32 range reduction (and the sin(theta+pi/2) fold) limits agreement to
    # ~1e-3 absolute, matching a float32 PyTorch module.
    TOL = 2e-3

    # t_dim < 128: narrow output, single-sin phase path.
    B1, T1 = 8, 32
    x1 = jax.random.uniform(k1, (B1,), jnp.float32, 0.0, 1000.0)
    out1 = jax.block_until_ready(sinusoidal_pos_emb(x1, T1))
    assert out1.shape == (B1, T1)
    assert jnp.allclose(out1, _reference(x1, T1), atol=TOL)

    # Non-multiple-of-8 batch exercises the ragged last block (no pad/slice).
    B2, T2 = 10, 64
    x2 = jax.random.uniform(k2, (B2,), jnp.float32, 0.0, 1000.0)
    out2 = jax.block_until_ready(sinusoidal_pos_emb(x2, T2))
    assert out2.shape == (B2, T2)
    assert jnp.allclose(out2, _reference(x2, T2), atol=TOL)

    # half_dim % 128 == 0 exercises the two lane-aligned half-width stores.
    B3, T3 = 16, 256
    x3 = jax.random.uniform(k3, (B3,), jnp.float32, 0.0, 1000.0)
    out3 = jax.block_until_ready(sinusoidal_pos_emb(x3, T3))
    assert out3.shape == (B3, T3)
    assert jnp.allclose(out3, _reference(x3, T3), atol=TOL)

    print("KERNEL_OK")
</pallas_src>

<mosaic_0001>
module attributes {stable_mosaic.version = 11 : i64} {
  func.func @_sinusoidal_kernel(%arg0: i32, %arg1: memref<8x1xf32, #tpu.memory_space<vmem>>, %arg2: memref<8x32xf32, #tpu.memory_space<vmem>>) attributes {dimension_semantics = [#tpu.dimension_semantics<parallel>], iteration_bounds = array<i64: 1>, scalar_prefetch = 0 : i64, scratch_operands = 0 : i64, tpu.core_type = #tpu.core_type<tc>, window_params = [{transform_indices = @transform_0, window_bounds = array<i64: 8, 1>}, {transform_indices = @transform_1, window_bounds = array<i64: 8, 32>}]} {
    %c0 = arith.constant 0 : index
    %c0_0 = arith.constant 0 : index
    %0 = vector.load %arg1[%c0, %c0_0] : memref<8x1xf32, #tpu.memory_space<vmem>>, vector<8x1xf32>
    %1 = tpu.iota {dimensions = array<i32: 1>} : vector<1x32xi32>
    %c16_i32 = arith.constant 16 : i32
    %2 = vector.broadcast %c16_i32 : i32 to vector<1x32xi32>
    %3 = arith.cmpi sge, %1, %2 : vector<1x32xi32>
    %c16_i32_1 = arith.constant 16 : i32
    %4 = vector.broadcast %c16_i32_1 : i32 to vector<1x32xi32>
    %5 = arith.subi %1, %4 : vector<1x32xi32>
    %6 = arith.select %3, %5, %1 : vector<1x32xi1>, vector<1x32xi32>
    %7 = arith.sitofp %6 : vector<1x32xi32> to vector<1x32xf32>
    %cst = arith.constant -0.614022672 : f32
    %8 = vector.broadcast %cst : f32 to vector<1x32xf32>
    %9 = arith.mulf %7, %8 : vector<1x32xf32>
    %10 = vector.broadcast %0 : vector<8x1xf32> to vector<8x32xf32>
    %11 = vector.broadcast %9 : vector<1x32xf32> to vector<8x32xf32>
    %12 = arith.mulf %10, %11 : vector<8x32xf32>
    %cst_2 = arith.constant 1.57079637 : f32
    %cst_3 = arith.constant 0.000000e+00 : f32
    %13 = vector.broadcast %cst_2 : f32 to vector<1x32xf32>
    %14 = vector.broadcast %cst_3 : f32 to vector<1x32xf32>
    %15 = arith.select %3, %13, %14 : vector<1x32xi1>, vector<1x32xf32>
    %16 = vector.broadcast %15 : vector<1x32xf32> to vector<8x32xf32>
    %17 = arith.addf %12, %16 : vector<8x32xf32>
    %18 = math.sin %17 : vector<8x32xf32>
    %c0_4 = arith.constant 0 : index
    %c0_5 = arith.constant 0 : index
    %19 = vector.load %arg2[%c0_4, %c0_5] : memref<8x32xf32, #tpu.memory_space<vmem>>, vector<8x32xf32>
    tpu.vector_store %arg2[%c0_4, %c0_5], %18 {strides = array<i32>} : memref<8x32xf32, #tpu.memory_space<vmem>>, vector<8x32xf32>,
    return
  }
  func.func @transform_0(%arg0: i32) -> (i32, i32) {
    %c0_i32 = arith.constant 0 : i32
    %c0_i32_0 = arith.constant 0 : i32
    return %arg0, %c0_i32 : i32, i32
  }
  func.func @transform_1(%arg0: i32) -> (i32, i32) {
    %c0_i32 = arith.constant 0 : i32
    %c0_i32_0 = arith.constant 0 : i32
    return %arg0, %c0_i32 : i32, i32
  }
}

</mosaic_0001>

<llo_original>
// kernel: tpu_custom_call.1
$region0: #{tpu_custom_call.1}
  #allocation0 [shape = 'u32[]', space=smem, size = 0x4, offset = 0x4, fixed_abs, tag = 'smem constant byte address 0x4 - core index']
  #allocation1 [shape = 'u32[144,128]{1,0:T(1,128)}', space=vmem, size = 0x12000, scoped, tag = 'internal scratch']
  %s0 = inlined_call_operand.vmem [shape: f32[8,1], index: 0, kind: input, shape index: {}]
  %s1 = inlined_call_operand.hbm [shape: f32[8,32], index: 1, kind: output, shape index: {}]
  %s2 = sld [smem:[#allocation0]]
  $region14: #{tpu_custom_call.1} parent=0
    _
  %s4 = ssub.s32 1, %s2
  %s5 = scalar_select 0, %s4, %s2
  $region1: #{tpu_custom_call.1} parent=0
    #allocation2 [shape = 'u8[4096]{0}', space=vmem, size = 0x1000, scoped, tag = 'output window, operand 0, single buffered']
    #allocation3 [shape = 's32[1]{0}', space=sflag, size = 0x4, scoped, tag = 'scoped memory for tpu_custom_call.1']
    %6 = vsyncpa [#allocation3], 0
    // Predicated region
    $region2: #{tpu_custom_call.1} parent=1 // pred_check
      _
    $region3: #{tpu_custom_call.1} parent=1 // pred_check_branch
      %8 = sbr.rel (0) target = $region5
    $region4: #{tpu_custom_call.1} parent=1 // pred_region
      _
    $region5: #{tpu_custom_call.1} parent=1 // pred_fallthru
      _
    %v9 = vld [vmem:[%s0] sm:$0xff]
    %v10 = vlaneseq
    %v11 = vand.u32 %v10, 127
    %vm12 = vcmp.ge.s32.totalorder %v11, 16
    %v13 = vsub.s32 %v11, 16
    %v14 = vsel %vm12, %v13, %v11
    %v15 = vcvt.s32.f32 %v14
    %v16 = vmul.f32 %v15, -0.6140227
    %18 = vset.pattern.permute.xlu0 0
    %19 = vperm.xlu0 %18, %v9
    %v20 = vpop.permute.xlu0 %19
    %v22 = vmul.f32 %v20, %v16
    %v23 = vsel %vm12, 1.5707964, 0.0
    %v24 = vadd.f32 %v22, %v23
    %v25 = vand.u32 2147483647, %v24
    %vm26 = vcmp.le.f32.partialorder %v25, 0.7853982
    %vm27 = vcmp.lt.s32.totalorder %v24, 0
    %v28 = vand.u32 %v24, 2139095040
    %v29 = vshrl.u32 %v28, 23
    %v30 = vsub.s32 %v29, 127
    %v31 = vand.u32 2147483647, %v24
    %v32 = vand.u32 %v31, 8388607
    %v33 = vor.u32 %v32, 8388608
    %v34 = vsub.s32 0, %v33
    %v35 = vadd.s32 %v30, 1
    %vm36 = vcmp.gt.s32.totalorder %v35, 0
    %v37 = vsel %vm36, %v35, 0
    %v38 = vshrl.u32 %v37, 5
    %v39 = vand.u32 %v37, 31
    %v40 = vsub.s32 32, %v39
    %v41 = vshrl.u32 683565275, %v40
    %v42 = vshll.u32 683565275, %v39
    %v43 = vshrl.u32 2475754826, %v40
    %v44 = vor.u32 %v42, %v43
    %v45 = vshll.u32 2475754826, %v39
    %v46 = vshrl.u32 2131351028, %v40
    %v47 = vor.u32 %v45, %v46
    %v48 = vshll.u32 2131351028, %v39
    %v49 = vshrl.u32 2102212464, %v40
    %v50 = vor.u32 %v48, %v49
    %v51 = vshll.u32 2102212464, %v39
    %v52 = vshrl.u32 920167782, %v40
    %v53 = vor.u32 %v51, %v52
    %v54 = vshll.u32 920167782, %v39
    %v55 = vshrl.u32 1326507024, %v40
    %v56 = vor.u32 %v54, %v55
    %vm57 = vcmp.lt.s32.totalorder %v38, 1
    %vm58 = vcmp.lt.s32.totalorder %v38, 2
    %vm59 = vcmp.lt.s32.totalorder %v38, 3
    %vm60 = vcmp.lt.s32.totalorder %v38, 4
    %v61 = vsel %vm57, %v41, %v44
    %v62 = vsel %vm60, %v50, 2102212464
    %v63 = vsel %vm59, %v47, %v62
    %v64 = vsel %vm58, %v61, %v63
    %v65 = vsel %vm57, %v44, %v47
    %v66 = vsel %vm60, %v53, 920167782
    %v67 = vsel %vm59, %v50, %v66
    %v68 = vsel %vm58, %v65, %v67
    %v69 = vsel %vm57, %v47, %v50
    %v70 = vsel %vm60, %v56, 1326507024
    %v71 = vsel %vm59, %v53, %v70
    %v72 = vsel %vm58, %v69, %v71
    %v73 = vshll.u32 %v33, 8
    %v74 = vmul.u32.u64.compose %v73, %v72
    %v75 = vextract.low.u32 %v74
    %v76 = vextract.high.u32 %v74
    %v77 = vmul.u32.u64.compose %v73, %v68
    %v78 = vextract.low.u32 %v77
    %v79 = vextract.high.u32 %v77
    %v80 = vmul.u32 %v73, %v64
    %v81 = vadd.s32 %v76, %v78
    %vm82 = vc.u32 %v76, %v78
    %v83 = vadd.s32 %v79, 1
    %v84 = vsel %vm82, %v83, %v79
    %v85 = vadd.s32 %v80, %v84
    %v86 = vadd.s32 %v85, 536870912
    %v87 = vshrl.u32 %v86, 30
    %v88 = vshll.u32 %v87, 30
    %v89 = vsub.s32 %v85, %v88
    %vm90 = vcmp.lt.s32.totalorder %v89, 0
    %v91 = vsub.s32 0, %v89
    %v92 = vsel %vm90, %v91, %v89
    %v93 = vclz %v92
    %v94 = vsub.s32 %v93, 2
    %vm95 = vcmp.gt.s32.totalorder 0, %v94
    %v96 = vsel %vm95, 0, %v94
    %v97 = vsub.s32 32, %v96
    %v98 = vshll.u32 %v89, %v96
    %v99 = vshrl.u32 %v81, %v97
    %v100 = vor.u32 %v98, %v99
    %v101 = vsub.s32 4294967266, %v96
    %v102 = vadd.s32 %v101, 127
    %v103 = vshll.u32 %v102, 23
    %v104 = vor.u32 4788187, %v103
    %v105 = vand.u32 2147483647, %v104
    %v107 = vcvt.s32.f32 %v100
    %v108 = vmul.f32 %v107, %v105
    %v109 = vxor.u32 %v108, 2147483648
    %v110 = vsel %vm27, %v109, %v108
    %v111 = vsub.s32 4, %v87
    %v112 = vsel %vm27, %v111, %v87
    %v113 = vsel %vm26, %v24, %v110
    %v114 = vsel %vm26, 0, %v112
    %v115 = vcosq.f32.pop %v113
    %v116 = vsinq.f32.pop %v113
    %vm117 = vweird.f32 %v24
    %v118 = vadd.s32 %v114, 3
    %v119 = vand.u32 %v118, 3
    %vm120 = vcmp.lt.s32.totalorder %v119, 2
    %vm121 = vcmp.eq.s32.totalorder %v119, 0
    %v122 = vxor.u32 %v116, 2147483648
    %v123 = vsel %vm121, %v115, %v122
    %vm124 = vcmp.eq.s32.totalorder %v119, 2
    %v125 = vxor.u32 %v115, 2147483648
    %v126 = vsel %vm124, %v125, %v116
    %v127 = vsel %vm120, %v123, %v126
    %v128 = vsel %vm117, nan, %v127
    %vm129 = vcmask 261120
    %130 = vst.msk [vmem:[#allocation2] sm:$0xff] %vm129, %v128
    // Predicated region
    $region6: #{tpu_custom_call.1} parent=1 // pred_check
      _
    $region7: #{tpu_custom_call.1} parent=1 // pred_check_branch
      %132 = sbr.rel (0) target = $region9
    $region8: #{tpu_custom_call.1} parent=1 // pred_region
      %s134 = ssub.s32 128, 128
      %135 = vsyncadd [#allocation3], %s134
      %s137 = sshll.u32 [#allocation2], 4
      %s138 = int_to_ptr.vmem [resolvable:$true] %s137
      %140 = dma.vmem_to_hbm [thread:$0]  %s138, 128, %s1, [#allocation3]
    $region9: #{tpu_custom_call.1} parent=1 // pred_fallthru
      _
    // Predicated region
    $region10: #{tpu_custom_call.1} parent=1 // pred_check
      _
    $region11: #{tpu_custom_call.1} parent=1 // pred_check_branch
      %142 = sbr.rel (0) target = $region13
    $region12: #{tpu_custom_call.1} parent=1 // pred_region
      %143 = dma.done [#allocation3], 128
    $region13: #{tpu_custom_call.1} parent=1 // pred_fallthru
      _
    %144 = vsyncpa [#allocation3], 1

</llo_original>
